<compile_context>
chip_gen: v5e
topology: v5e:2x2
jax: 0.10.0
libtpu: 0.0.40
codegen_flags: <defaults>
</compile_context>

<pallas_src>
import functools

import jax
import jax.numpy as jnp
from jax.experimental import pallas as pl
from jax.experimental.pallas import tpu as pltpu

_LANES = 1024          # lane-dense last dim (multiple of 128)
_MAX_ROW_TILE = 1024   # 1024x1024 f32 block = 4 MiB; (in+out) x double-buffer
                       # = 16 MiB, covered by the explicit vmem limit below.
_VMEM_LIMIT = 48 << 20 # safe on v5e/v6e (128 MiB phys) and v7x (64 MiB phys)


def _round_up(a: int, b: int) -> int:
    return ((a + b - 1) // b) * b


def _choose_row_tile(rows: int, sublane_mult: int) -> int:
    """Pick a row tile that (a) is a legal sublane multiple, (b) gives >= 2
    grid steps when possible (v7x megacore), (c) balances block sizes so the
    ragged last block over-pads by < one sublane group."""
    if rows <= sublane_mult:
        return rows  # single full-extent block (legal: equals the array dim)
    num_blocks = max(pl.cdiv(rows, _MAX_ROW_TILE), 2)
    tile = _round_up(pl.cdiv(rows, num_blocks), sublane_mult)
    return min(tile, _MAX_ROW_TILE)


def _linear11_kernel(wb_ref, x_ref, o_ref):
    # wb_ref: (2,) f32 in SMEM  -> [weight, bias]
    # x_ref, o_ref: (row_tile, _LANES) tiles in VMEM
    w = wb_ref[0]
    b = wb_ref[1]
    y = x_ref[...].astype(jnp.float32) * w + b   # VPU FMA in f32
    o_ref[...] = y.astype(o_ref.dtype)


@jax.jit
def linear_model(x, weight, bias):
    """Pallas equivalent of torch.nn.Linear(1, 1) forward.

    x:      (..., 1) float32/bfloat16
    weight: (1, 1)   (torch layout: [out_features, in_features])
    bias:   (1,)
    returns same shape/dtype as x
    """
    orig_shape = x.shape
    dtype = x.dtype
    n = x.size                       # last dim is 1 (in_features == 1)

    # Fold weight + bias into one (2,) f32 SMEM operand.
    wb = jnp.concatenate([jnp.ravel(weight), jnp.ravel(bias)]).astype(jnp.float32)

    # sublane multiple for the block's second-minor dim: 8 (f32) / 16 (bf16) / 32 (8-bit)
    sub_mult = max(8, (8 * 4) // dtype.itemsize)

    rows = pl.cdiv(n, _LANES)
    padded = rows * _LANES

    x_flat = x.reshape(-1)
    if padded != n:
        # Ragged fallback: pays one pad copy in + one slice copy out.
        # Aligned N (n % 1024 == 0) is fully copy-free (reshape = bitcast).
        x_flat = jnp.pad(x_flat, (0, padded - n))
    x_slab = x_flat.reshape(rows, _LANES)

    row_tile = _choose_row_tile(rows, sub_mult)
    grid = (pl.cdiv(rows, row_tile),)   # last block may be partial; Pallas masks it

    out_slab = pl.pallas_call(
        _linear11_kernel,
        out_shape=jax.ShapeDtypeStruct((rows, _LANES), dtype),
        grid=grid,
        in_specs=[
            pl.BlockSpec(memory_space=pltpu.MemorySpace.SMEM),    # wb (2,)
            pl.BlockSpec((row_tile, _LANES), lambda i: (i, 0)),   # x slab
        ],
        out_specs=pl.BlockSpec((row_tile, _LANES), lambda i: (i, 0)),
        compiler_params=pltpu.CompilerParams(
            dimension_semantics=("parallel",),
            vmem_limit_bytes=_VMEM_LIMIT,
        ),
        cost_estimate=pl.CostEstimate(
            flops=2 * rows * _LANES,
            transcendentals=0,
            bytes_accessed=2 * dtype.itemsize * rows * _LANES,
        ),
    )(wb, x_slab)

    out_flat = out_slab.reshape(-1)
    if padded != n:
        out_flat = out_flat[:n]
    return out_flat.reshape(orig_shape)


if __name__ == "__main__":
    key = jax.random.PRNGKey(0)
    kx1, kx2, kw, kb = jax.random.split(key, 4)

    # Parameters (torch layout: weight (out, in) = (1, 1), bias (1,)).
    weight = jax.random.uniform(kw, (1, 1), dtype=jnp.float32, minval=-1.0, maxval=1.0)
    bias = jax.random.uniform(kb, (1,), dtype=jnp.float32, minval=-1.0, maxval=1.0)

    # Case 1: tiny batch consistent with Linear(1, 1) usage (ragged path).
    n1 = 8
    x1 = jax.random.normal(kx1, (n1, 1), dtype=jnp.float32)
    y1 = jax.block_until_ready(linear_model(x1, weight, bias))
    ref1 = x1 @ weight.T + bias
    assert y1.shape == (n1, 1)
    assert jnp.allclose(y1, ref1, atol=1e-6, rtol=1e-6)

    # Case 2: lane-aligned batch -> copy-free path, 2-step "parallel" grid.
    n2 = 32 * 1024
    x2 = jax.random.normal(kx2, (n2, 1), dtype=jnp.float32)
    y2 = jax.block_until_ready(linear_model(x2, weight, bias))
    ref2 = x2 @ weight.T + bias
    assert y2.shape == (n2, 1)
    assert jnp.allclose(y2, ref2, atol=1e-6, rtol=1e-6)

    print("KERNEL_OK")
</pallas_src>

<mosaic_0001>
module attributes {stable_mosaic.version = 11 : i64} {
  func.func @_linear11_kernel(%arg0: i32, %arg1: memref<2xf32, #tpu.memory_space<smem>>, %arg2: memref<1x1024xf32, #tpu.memory_space<vmem>>, %arg3: memref<1x1024xf32, #tpu.memory_space<vmem>>) attributes {dimension_semantics = [#tpu.dimension_semantics<parallel>], iteration_bounds = array<i64: 1>, scalar_prefetch = 0 : i64, scratch_operands = 0 : i64, tpu.core_type = #tpu.core_type<tc>, window_params = [{transform_indices = @transform_0, window_bounds = array<i64: 2>}, {transform_indices = @transform_1, window_bounds = array<i64: 1, 1024>}, {transform_indices = @transform_2, window_bounds = array<i64: 1, 1024>}]} {
    %c0 = arith.constant 0 : index
    %0 = memref.load %arg1[%c0] : memref<2xf32, #tpu.memory_space<smem>>
    %c1 = arith.constant 1 : index
    %1 = memref.load %arg1[%c1] : memref<2xf32, #tpu.memory_space<smem>>
    %c0_0 = arith.constant 0 : index
    %c0_1 = arith.constant 0 : index
    %2 = vector.load %arg2[%c0_0, %c0_1] : memref<1x1024xf32, #tpu.memory_space<vmem>>, vector<1x1024xf32>
    %3 = vector.broadcast %0 : f32 to vector<1x1024xf32>
    %4 = arith.mulf %2, %3 : vector<1x1024xf32>
    %5 = vector.broadcast %1 : f32 to vector<1x1024xf32>
    %6 = arith.addf %4, %5 : vector<1x1024xf32>
    %c0_2 = arith.constant 0 : index
    %c0_3 = arith.constant 0 : index
    %7 = vector.load %arg3[%c0_2, %c0_3] : memref<1x1024xf32, #tpu.memory_space<vmem>>, vector<1x1024xf32>
    tpu.vector_store %arg3[%c0_2, %c0_3], %6 {strides = array<i32>} : memref<1x1024xf32, #tpu.memory_space<vmem>>, vector<1x1024xf32>,
    return
  }
  func.func @transform_0(%arg0: i32) -> i32 {
    %c0_i32 = arith.constant 0 : i32
    %c0_i32_0 = arith.constant 0 : i32
    return %c0_i32 : i32
  }
  func.func @transform_1(%arg0: i32) -> (i32, i32) {
    %c0_i32 = arith.constant 0 : i32
    %c0_i32_0 = arith.constant 0 : i32
    return %arg0, %c0_i32 : i32, i32
  }
  func.func @transform_2(%arg0: i32) -> (i32, i32) {
    %c0_i32 = arith.constant 0 : i32
    %c0_i32_0 = arith.constant 0 : i32
    return %arg0, %c0_i32 : i32, i32
  }
}

</mosaic_0001>

<llo_original>
// kernel: linear_model.1
$region0: #{linear_model.1}
  #allocation0 [shape = 'u32[]', space=smem, size = 0x4, offset = 0x4, fixed_abs, tag = 'smem constant byte address 0x4 - core index']
  #allocation1 [shape = 'u32[72,128]{1,0:T(1,128)}', space=vmem, size = 0x9000, scoped, tag = 'internal scratch']
  %s0 = inlined_call_operand.vmem [shape: f32[2], index: 0, kind: input, shape index: {}]
  %s1 = inlined_call_operand.vmem [shape: f32[1,1024], index: 1, kind: input, shape index: {}]
  %s2 = inlined_call_operand.vmem [shape: f32[1,1024], index: 2, kind: output, shape index: {}]
  %s3 = sld [smem:[#allocation0]]
  $region22: #{linear_model.1} parent=0
    _
  %s5 = ssub.s32 1, %s3
  %s6 = scalar_select 0, %s5, %s3
  $region1: #{linear_model.1} parent=0
    #allocation2 [shape = 'u8[512]{0}', space=smem, size = 0x200, scoped, tag = 'input window, operand 0, single buffered']
    #allocation3 [shape = 's32[1]{0}', space=sflag, size = 0x4, scoped, tag = 'scoped memory for linear_model.1']
    %7 = vsyncpa [#allocation3], 0
    // Predicated region
    $region2: #{linear_model.1} parent=1 // pred_check
      _
    $region3: #{linear_model.1} parent=1 // pred_check_branch
      %9 = sbr.rel (0) target = $region5
    $region4: #{linear_model.1} parent=1 // pred_region
      %11 = vsyncadd [#allocation3], 0
      %s13 = sshll.u32 %s0, 4
      %s14 = int_to_ptr.vmem [resolvable:$true] %s13
      %16 = dma.vmem_to_smem %s14, 16, [#allocation2], [#allocation3]
    $region5: #{linear_model.1} parent=1 // pred_fallthru
      _
    // Predicated region
    $region6: #{linear_model.1} parent=1 // pred_check
      _
    $region7: #{linear_model.1} parent=1 // pred_check_branch
      %18 = sbr.rel (0) target = $region9
    $region8: #{linear_model.1} parent=1 // pred_region
      _
    $region9: #{linear_model.1} parent=1 // pred_fallthru
      _
    // Predicated region
    $region10: #{linear_model.1} parent=1 // pred_check
      _
    $region11: #{linear_model.1} parent=1 // pred_check_branch
      %20 = sbr.rel (0) target = $region13
    $region12: #{linear_model.1} parent=1 // pred_region
      %22 = dma.done [#allocation3], 16
    $region13: #{linear_model.1} parent=1 // pred_fallthru
      _
    %23 = sfence
    %s24 = sld [smem:[#allocation2]]
    %s25 = sld [smem:[#allocation2 + $0x1]]
    %v26 = vld [vmem:[%s1] sm:$0xff]
    %v27 = vstv %s24
    %v28 = vmul.f32 %v26, %v27
    %v29 = vstv %s25
    %v30 = vadd.f32 %v28, %v29
    %31 = vst [vmem:[%s2] sm:$0xff] %v30
    // Predicated region
    $region14: #{linear_model.1} parent=1 // pred_check
      _
    $region15: #{linear_model.1} parent=1 // pred_check_branch
      %33 = sbr.rel (0) target = $region17
    $region16: #{linear_model.1} parent=1 // pred_region
      _
    $region17: #{linear_model.1} parent=1 // pred_fallthru
      _
    // Predicated region
    $region18: #{linear_model.1} parent=1 // pred_check
      _
    $region19: #{linear_model.1} parent=1 // pred_check_branch
      %35 = sbr.rel (0) target = $region21
    $region20: #{linear_model.1} parent=1 // pred_region
      _
    $region21: #{linear_model.1} parent=1 // pred_fallthru
      _
    %36 = vsyncpa [#allocation3], 1

</llo_original>
